<compile_context>
chip_gen: v5e
topology: v5e:2x2
jax: 0.10.0
libtpu: 0.0.40
codegen_flags: <defaults>
</compile_context>

<pallas_src>
import math
from functools import partial

import numpy as np
import jax
import jax.numpy as jnp
from jax.experimental import pallas as pl
from jax.experimental.pallas import tpu as pltpu


# ---------------------------------------------------------------------------
# Helpers
# ---------------------------------------------------------------------------
def _round_up(v, m):
    return (v + m - 1) // m * m


def _cdiv(a, b):
    return (a + b - 1) // b


def _vmem_cap_bytes():
    """Upper clamp for vmem_limit_bytes; never exceed ~3/4 of physical VMEM."""
    try:
        cap = int(pltpu.get_tpu_info().vmem_capacity_bytes)
        return max((cap * 3) // 4, 16 << 20)
    except Exception:
        return 48 << 20        # safe on v7x (64 MiB/TC), conservative on v5e/v6e


# Atoms-on-sublanes layout is used when num_atoms <= this (typical PE regime).
_SMALL_ATOM_THRESHOLD = 96


# ---------------------------------------------------------------------------
# Kernels
# ---------------------------------------------------------------------------
def _herglotz_rows_kernel(x_ref, w_ref, o_ref):
    """Points on sublanes / atoms on lanes.

    x_ref: (TN, 8)  rows = points, cols 0-2 = xyz, col 3 = 1, cols 4-7 = 0
    w_ref: (8, 2*A_pad)  [wr | wi] with bias in row 3 (pinned in VMEM)
    o_ref: (TN, A_pad)
    """
    # One MXU matmul per tile (bias folded in via the ones column).
    # NB: default precision may run the f32 matmul as bf16 multi-pass on the
    # MXU; this is the intended trade (contraction rides the free MXU slot).
    p = jnp.dot(x_ref[...], w_ref[...], preferred_element_type=jnp.float32)
    a_pad = o_ref.shape[1]
    o_ref[...] = (jnp.cos(p[:, a_pad:]) * jnp.exp(p[:, :a_pad])).astype(o_ref.dtype)


def _herglotz_cols_kernel(w_ref, x_ref, o_ref):
    """Atoms on sublanes / points on lanes (small num_atoms).

    w_ref: (2*A_pad, 8)  rows [0,A_pad) = wr (+b_R in col 3), rows [A_pad,...) = wi (+b_I)
    x_ref: (8, TN)  rows 0-2 = xyz, row 3 = 1, rows 4-7 = 0
    o_ref: (A_pad, TN)
    """
    p = jnp.dot(w_ref[...], x_ref[...], preferred_element_type=jnp.float32)
    a_pad = o_ref.shape[0]
    o_ref[...] = (jnp.cos(p[a_pad:, :]) * jnp.exp(p[:a_pad, :])).astype(o_ref.dtype)


# ---------------------------------------------------------------------------
# pallas_call wrappers
# ---------------------------------------------------------------------------
def _herglotz_rows(x_aug, w_packed, a_pad, out_dtype):
    n = x_aug.shape[0]
    out_bytes = np.dtype(out_dtype).itemsize

    # ~2 MiB f32 output tile, clamped; never exceed the (rounded) row count.
    tn = _round_up(max((2 << 20) // (a_pad * 4), 256), 8)
    tn = min(tn, 4096, _round_up(max(n, 1), 8))
    if n >= 16:                                    # keep >= 2 grid steps (v7x dual-TC)
        tn = min(tn, _round_up(_cdiv(n, 2), 8))
    tn = max(tn, 8)
    grid = (_cdiv(n, tn),)

    vmem_needed = (2 * tn * 8 * 4                      # x tiles (double buffered)
                   + 2 * tn * a_pad * out_bytes        # out tiles
                   + 2 * 8 * 2 * a_pad * 4             # pinned packed weights
                   + 3 * tn * 2 * a_pad * 4            # matmul result + elementwise temps
                   + (4 << 20))
    vmem_limit = int(min(max(vmem_needed, 16 << 20), _vmem_cap_bytes()))

    return pl.pallas_call(
        _herglotz_rows_kernel,
        out_shape=jax.ShapeDtypeStruct((n, a_pad), out_dtype),
        grid_spec=pltpu.PrefetchScalarGridSpec(
            num_scalar_prefetch=0,
            grid=grid,
            in_specs=[
                pl.BlockSpec((tn, 8), lambda i: (i, 0)),         # x streams over N
                pl.BlockSpec((8, 2 * a_pad), lambda i: (0, 0)),  # packed W pinned in VMEM
            ],
            out_specs=pl.BlockSpec((tn, a_pad), lambda i: (i, 0)),
        ),
        compiler_params=pltpu.CompilerParams(
            dimension_semantics=("parallel",),
            vmem_limit_bytes=vmem_limit,
        ),
        cost_estimate=pl.CostEstimate(
            flops=int(2 * n * 8 * 2 * a_pad + 3 * n * a_pad),
            transcendentals=int(2 * n * a_pad),
            bytes_accessed=int(n * 8 * 4 + 8 * 2 * a_pad * 4 + n * a_pad * out_bytes),
        ),
    )(x_aug, w_packed)


def _herglotz_cols(x_aug_t, w_packed, a_pad, out_dtype):
    n = x_aug_t.shape[1]
    out_bytes = np.dtype(out_dtype).itemsize

    tn = _round_up(max((2 << 20) // (a_pad * 4), 512), 128)
    tn = min(tn, 8192, _round_up(max(n, 1), 128))
    if n >= 256:                                   # keep >= 2 grid steps (v7x dual-TC)
        tn = min(tn, _round_up(_cdiv(n, 2), 128))
    tn = max(tn, 128)
    grid = (_cdiv(n, tn),)

    vmem_needed = (2 * 8 * tn * 4
                   + 2 * a_pad * tn * out_bytes
                   + 2 * 2 * a_pad * 8 * 4
                   + 3 * 2 * a_pad * tn * 4
                   + (4 << 20))
    vmem_limit = int(min(max(vmem_needed, 16 << 20), _vmem_cap_bytes()))

    return pl.pallas_call(
        _herglotz_cols_kernel,
        out_shape=jax.ShapeDtypeStruct((a_pad, n), out_dtype),
        grid_spec=pltpu.PrefetchScalarGridSpec(
            num_scalar_prefetch=0,
            grid=grid,
            in_specs=[
                pl.BlockSpec((2 * a_pad, 8), lambda i: (0, 0)),  # packed W pinned in VMEM
                pl.BlockSpec((8, tn), lambda i: (0, i)),         # x^T streams over N (lanes)
            ],
            out_specs=pl.BlockSpec((a_pad, tn), lambda i: (0, i)),
        ),
        compiler_params=pltpu.CompilerParams(
            dimension_semantics=("parallel",),
            vmem_limit_bytes=vmem_limit,
        ),
        cost_estimate=pl.CostEstimate(
            flops=int(2 * n * 8 * 2 * a_pad + 3 * n * a_pad),
            transcendentals=int(2 * n * a_pad),
            bytes_accessed=int(n * 8 * 4 + 2 * a_pad * 8 * 4 + n * a_pad * out_bytes),
        ),
    )(w_packed, x_aug_t)


def herglotz_pallas(x_flat, wr_s, wi_s, b_r, b_i, *, out_dtype=None):
    """x_flat: (N, 3); wr_s/wi_s: (A, 3) with w_R/rref folded in; b_r/b_i: (A,)."""
    n, d = x_flat.shape
    assert d == 3, "input_dim must be 3"
    a = wr_s.shape[0]
    out_dtype = out_dtype if out_dtype is not None else x_flat.dtype
    x32 = x_flat.astype(jnp.float32)

    if a <= _SMALL_ATOM_THRESHOLD:
        # Atoms on sublanes (pad A only to 8), points on lanes.
        a_pad = _round_up(max(a, 1), 8)
        x_aug_t = jnp.zeros((8, n), jnp.float32)
        x_aug_t = x_aug_t.at[0:3, :].set(x32.T)
        x_aug_t = x_aug_t.at[3, :].set(1.0)                 # bias column
        w = jnp.zeros((2 * a_pad, 8), jnp.float32)
        w = w.at[:a, 0:3].set(wr_s)
        w = w.at[:a, 3].set(b_r)
        w = w.at[a_pad:a_pad + a, 0:3].set(wi_s)
        w = w.at[a_pad:a_pad + a, 3].set(b_i)
        out_t = _herglotz_cols(x_aug_t, w, a_pad, out_dtype)  # (A_pad, N)
        out_t = out_t if a == a_pad else out_t[:a, :]
        return out_t.T                                        # (N, A)

    # Points on sublanes, atoms on lanes (lane-dense output).
    a_pad = _round_up(a, 128)
    x_aug = jnp.zeros((n, 8), jnp.float32)
    x_aug = x_aug.at[:, 0:3].set(x32)
    x_aug = x_aug.at[:, 3].set(1.0)                           # bias column
    w = jnp.zeros((8, 2 * a_pad), jnp.float32)
    w = w.at[0:3, :a].set(wr_s.T)
    w = w.at[3, :a].set(b_r)
    w = w.at[0:3, a_pad:a_pad + a].set(wi_s.T)
    w = w.at[3, a_pad:a_pad + a].set(b_i)
    out = _herglotz_rows(x_aug, w, a_pad, out_dtype)          # (N, A_pad)
    return out if a == a_pad else out[:, :a]


# ---------------------------------------------------------------------------
# Parameter init + JAX glue (atom generation, quaternion rotation)
# ---------------------------------------------------------------------------
def _generate_herglotz_vectors(key, num_atoms, dim=3):
    k1, k2 = jax.random.split(key)
    a_r = jax.random.normal(k1, (num_atoms, dim), jnp.float32)
    a_r = a_r / (math.sqrt(2.0) * jnp.linalg.norm(a_r, axis=-1, keepdims=True))
    a_i = jax.random.normal(k2, (num_atoms, dim), jnp.float32)
    a_i = a_i - 2.0 * jnp.sum(a_i * a_r, axis=-1, keepdims=True) * a_r
    a_i = a_i / (math.sqrt(2.0) * jnp.linalg.norm(a_i, axis=-1, keepdims=True))
    return a_r, a_i


def _quaternion_rotate(v, q):
    """Rotate each row of v (A, 3) by its unit quaternion q (A, 4) = (w, x, y, z)."""
    q = q / jnp.linalg.norm(q, axis=-1, keepdims=True)
    w, qv = q[:, :1], q[:, 1:]
    t = 2.0 * jnp.cross(qv, v)
    return v + w * t + jnp.cross(qv, t)


def init_params(key, num_atoms=None, L=None, input_dim=3, rref=1.0, init=False):
    if num_atoms is None:
        if L is None:
            raise ValueError("Either L or num_atoms must be provided.")
        num_atoms = (L + 1) * (L + 2) // 2
    if input_dim != 3:
        raise ValueError("Input dimension must be 3.")
    ka, kw = jax.random.split(key)
    a_real, a_imag = _generate_herglotz_vectors(ka, num_atoms, input_dim)
    if init:
        l_upper = math.ceil(-1.5 + math.sqrt(2 * num_atoms + 0.25))
        exps = [0]
        for l in range(1, l_upper + 1):
            exps.extend([l] * (l + 1))
        w_r = jnp.asarray(exps[:num_atoms], jnp.float32) / math.e
    else:
        w_r = jax.random.uniform(kw, (num_atoms,), jnp.float32,
                                 -1.0 / input_dim, 1.0 / input_dim)
    # TODO(synk): QuaternionRotation's definition is not in the spec; we use one
    # learnable unit quaternion per atom, initialized to the identity rotation.
    quat = jnp.tile(jnp.asarray([1.0, 0.0, 0.0, 0.0], jnp.float32), (num_atoms, 1))
    return {
        "A_real": a_real,
        "A_imag": a_imag,
        "w_R": w_r,
        "b_R": jnp.zeros((num_atoms,), jnp.float32),
        "b_I": jnp.zeros((num_atoms,), jnp.float32),
        "rref": jnp.asarray(rref, jnp.float32),
        "quat": quat,
    }


@partial(jax.jit, static_argnames=("out_dtype",))
def normalized_regular_herglotz_pe(params, x, *, out_dtype=None):
    """Forward pass of NormalizedRegularHerglotzPE: x (..., 3) -> (..., num_atoms)."""
    a_rot_real = _quaternion_rotate(params["A_real"], params["quat"])
    a_rot_imag = _quaternion_rotate(params["A_imag"], params["quat"])
    scale = (params["w_R"] / params["rref"])[:, None]          # (A, 1), folded once
    wr_s = a_rot_real * scale                                  # (A, 3)
    wi_s = a_rot_imag * scale
    lead = x.shape[:-1]
    x_flat = x.reshape(-1, x.shape[-1])
    out = herglotz_pallas(x_flat, wr_s, wi_s, params["b_R"], params["b_I"],
                          out_dtype=out_dtype)
    return out.reshape(*lead, out.shape[-1])


def reference_forward(params, x):
    """Pure-JAX reference matching the PyTorch module (no matmul -> precision-stable)."""
    a_rot_real = _quaternion_rotate(params["A_real"], params["quat"])
    a_rot_imag = _quaternion_rotate(params["A_imag"], params["quat"])
    ax_r = jnp.sum(x[..., None, :] * a_rot_real, axis=-1)      # (..., A)
    ax_i = jnp.sum(x[..., None, :] * a_rot_imag, axis=-1)
    cos_term = jnp.cos(params["w_R"] * (ax_i / params["rref"]) + params["b_I"])
    exp_term = jnp.exp(params["w_R"] * (ax_r / params["rref"]) + params["b_R"])
    return cos_term * exp_term


# ---------------------------------------------------------------------------
# Demo / self-test
# ---------------------------------------------------------------------------
if __name__ == "__main__":
    key = jax.random.PRNGKey(0)
    kp, kb1, kb2, kx, kp2, kx2 = jax.random.split(key, 6)

    # Tolerance: the in-kernel MXU f32 matmul may run as reduced-precision
    # passes depending on default matmul precision; 1e-2 comfortably covers
    # that while still catching structural errors.
    RTOL = ATOL = 1e-2

    # Case 1: small num_atoms (L=3 -> A=10) -> atoms-on-sublanes kernel.
    params = init_params(kp, L=3)
    params["b_R"] = 0.05 * jax.random.normal(kb1, (10,), jnp.float32)
    params["b_I"] = 0.05 * jax.random.normal(kb2, (10,), jnp.float32)
    x = jax.random.normal(kx, (2, 16, 3), jnp.float32)          # (batch=2, points=16, 3)
    out = jax.block_until_ready(normalized_regular_herglotz_pe(params, x))
    ref = jax.block_until_ready(reference_forward(params, x))
    assert out.shape == (2, 16, 10), out.shape
    np.testing.assert_allclose(np.asarray(out), np.asarray(ref), rtol=RTOL, atol=ATOL)

    # Case 2: larger num_atoms (A=160) -> atoms-on-lanes (lane-dense) kernel.
    params2 = init_params(kp2, num_atoms=160)
    x2 = jax.random.normal(kx2, (4, 8, 3), jnp.float32)
    out2 = jax.block_until_ready(normalized_regular_herglotz_pe(params2, x2))
    ref2 = jax.block_until_ready(reference_forward(params2, x2))
    assert out2.shape == (4, 8, 160), out2.shape
    np.testing.assert_allclose(np.asarray(out2), np.asarray(ref2), rtol=RTOL, atol=ATOL)

    print("KERNEL_OK")
</pallas_src>

<mosaic_0001>
module attributes {stable_mosaic.version = 11 : i64} {
  func.func @_herglotz_cols_kernel(%arg0: i32, %arg1: memref<32x8xf32, #tpu.memory_space<vmem>>, %arg2: memref<8x128xf32, #tpu.memory_space<vmem>>, %arg3: memref<16x128xf32, #tpu.memory_space<vmem>>) attributes {dimension_semantics = [#tpu.dimension_semantics<parallel>], iteration_bounds = array<i64: 1>, scalar_prefetch = 0 : i64, scratch_operands = 0 : i64, tpu.core_type = #tpu.core_type<tc>, window_params = [{pipeline_mode = #tpu.pipeline_mode<synchronous>, transform_indices = @transform_0, window_bounds = array<i64: 32, 8>}, {transform_indices = @transform_1, window_bounds = array<i64: 8, 128>}, {transform_indices = @transform_2, window_bounds = array<i64: 16, 128>}]} {
    %c0 = arith.constant 0 : index
    %c0_0 = arith.constant 0 : index
    %0 = vector.load %arg1[%c0, %c0_0] : memref<32x8xf32, #tpu.memory_space<vmem>>, vector<32x8xf32>
    %c0_1 = arith.constant 0 : index
    %c0_2 = arith.constant 0 : index
    %1 = vector.load %arg2[%c0_1, %c0_2] : memref<8x128xf32, #tpu.memory_space<vmem>>, vector<8x128xf32>
    %cst = arith.constant dense<0.000000e+00> : vector<32x128xf32>
    %2 = tpu.matmul %0, %1, %cst {dimension_numbers = #tpu.dot_dimension_numbers<[1], [0], [0], [1], [0, 0, 1, 1], [], []>} : vector<32x8xf32>, vector<8x128xf32>, vector<32x128xf32> -> vector<32x128xf32>
    %3 = vector.extract_strided_slice %2 {offsets = [16, 0], sizes = [16, 128], strides = [1, 1]} : vector<32x128xf32> to vector<16x128xf32>
    %4 = math.cos %3 : vector<16x128xf32>
    %5 = vector.extract_strided_slice %2 {offsets = [0, 0], sizes = [16, 128], strides = [1, 1]} : vector<32x128xf32> to vector<16x128xf32>
    %6 = math.exp %5 : vector<16x128xf32>
    %7 = arith.mulf %4, %6 : vector<16x128xf32>
    %c0_3 = arith.constant 0 : index
    %c0_4 = arith.constant 0 : index
    %8 = vector.load %arg3[%c0_3, %c0_4] : memref<16x128xf32, #tpu.memory_space<vmem>>, vector<16x128xf32>
    tpu.vector_store %arg3[%c0_3, %c0_4], %7 {strides = array<i32>} : memref<16x128xf32, #tpu.memory_space<vmem>>, vector<16x128xf32>,
    return
  }
  func.func @transform_0(%arg0: i32) -> (i32, i32) {
    %c0_i32 = arith.constant 0 : i32
    %c0_i32_0 = arith.constant 0 : i32
    %c0_i32_1 = arith.constant 0 : i32
    return %c0_i32, %c0_i32_0 : i32, i32
  }
  func.func @transform_1(%arg0: i32) -> (i32, i32) {
    %c0_i32 = arith.constant 0 : i32
    %c0_i32_0 = arith.constant 0 : i32
    return %c0_i32, %arg0 : i32, i32
  }
  func.func @transform_2(%arg0: i32) -> (i32, i32) {
    %c0_i32 = arith.constant 0 : i32
    %c0_i32_0 = arith.constant 0 : i32
    return %c0_i32, %arg0 : i32, i32
  }
}

</mosaic_0001>

<llo_original>
// kernel: normalized_regular_herglotz_pe.1
$region0: #{normalized_regular_herglotz_pe.1}
  #allocation0 [shape = 'u32[]', space=smem, size = 0x4, offset = 0x4, fixed_abs, tag = 'smem constant byte address 0x4 - core index']
  #allocation1 [shape = 'u32[72,128]{1,0:T(1,128)}', space=vmem, size = 0x9000, scoped, tag = 'internal scratch']
  %s0 = inlined_call_operand.vmem [shape: f32[32,8], index: 0, kind: input, shape index: {}]
  %s1 = inlined_call_operand.vmem [shape: f32[8,32], index: 1, kind: input, shape index: {}]
  %s2 = inlined_call_operand.vmem [shape: f32[16,32], index: 2, kind: output, shape index: {}]
  %s3 = sld [smem:[#allocation0]]
  $region18: #{normalized_regular_herglotz_pe.1} parent=0
    _
  %s5 = ssub.s32 1, %s3
  %s6 = scalar_select 0, %s5, %s3
  // Predicated region
  $region2: #{normalized_regular_herglotz_pe.1} parent=0 // pred_check
    _
  $region3: #{normalized_regular_herglotz_pe.1} parent=0 // pred_check_branch
    %8 = sbr.rel (0) target = $region5
  $region4: #{normalized_regular_herglotz_pe.1} parent=0 // pred_region
    _
  $region5: #{normalized_regular_herglotz_pe.1} parent=0 // pred_fallthru
    _
  // Predicated region
  $region6: #{normalized_regular_herglotz_pe.1} parent=0 // pred_check
    _
  $region7: #{normalized_regular_herglotz_pe.1} parent=0 // pred_check_branch
    %10 = sbr.rel (0) target = $region9
  $region8: #{normalized_regular_herglotz_pe.1} parent=0 // pred_region
    _
  $region9: #{normalized_regular_herglotz_pe.1} parent=0 // pred_fallthru
    _
  %v11 = vld [vmem:[%s0] sm:$0xff]
  %v12 = vld [vmem:[%s0 + $0x8] sm:$0xff]
  %v13 = vld [vmem:[%s0 + $0x10] sm:$0xff]
  %v14 = vld [vmem:[%s0 + $0x18] sm:$0xff]
  %v15 = vld [vmem:[%s1] sm:$0xff]
  %vm16 = vcmask 64512
  %v18 = vsel %vm16, %v11, 0
  %v21 = vsel %vm16, %v12, 0
  %v24 = vsel %vm16, %v13, 0
  %v27 = vsel %vm16, %v14, 0
  %29 = vmatpush.msra.mxu0 0.0
  %30 = vmatpush.msra.mxu0 0.0
  %31 = vmatpush.msra.mxu0 0.0
  %32 = vmatpush.msra.mxu0 0.0
  %33 = vmatpush.msra.mxu0 0.0
  %34 = vmatpush.msra.mxu0 0.0
  %35 = vmatpush.msra.mxu0 0.0
  %36 = vmatpush.msra.mxu0 0.0
  %37 = vmatpush.msra.mxu0 0.0
  %38 = vmatpush.msra.mxu0 0.0
  %39 = vmatpush.msra.mxu0 0.0
  %40 = vmatpush.msra.mxu0 0.0
  %41 = vmatpush.msra.mxu0 0.0
  %42 = vmatpush.msra.mxu0 0.0
  %43 = vmatpush.msra.mxu0 0.0
  %44 = vmatpush.msra.mxu0 %v15
  %45 = vmatmul.f32.gmra.mxu0 %v18
  %v46 = vpop.f32.mrf.mxu0
  %v47 = vadd.f32 0.0, %v46
  %48 = vmatmul.f32.gmra.mxu0 %v21
  %v49 = vpop.f32.mrf.mxu0
  %v50 = vadd.f32 0.0, %v49
  %51 = vmatmul.f32.gmra.mxu0 %v24
  %v52 = vpop.f32.mrf.mxu0
  %v53 = vadd.f32 0.0, %v52
  %54 = vmatmul.f32.gmra.mxu0 %v27
  %v55 = vpop.f32.mrf.mxu0
  %v56 = vadd.f32 0.0, %v55
  %57 = vdwg.mxu0
  %v58 = vand.u32 2147483647, %v53
  %vm59 = vcmp.le.f32.partialorder %v58, 0.7853982
  %vm60 = vcmp.lt.s32.totalorder %v53, 0
  %v61 = vand.u32 %v53, 2139095040
  %v62 = vshrl.u32 %v61, 23
  %v63 = vsub.s32 %v62, 127
  %v64 = vand.u32 2147483647, %v53
  %v65 = vand.u32 %v64, 8388607
  %v66 = vor.u32 %v65, 8388608
  %v67 = vsub.s32 0, %v66
  %v68 = vadd.s32 %v63, 1
  %vm69 = vcmp.gt.s32.totalorder %v68, 0
  %v70 = vsel %vm69, %v68, 0
  %v71 = vshrl.u32 %v70, 5
  %v72 = vand.u32 %v70, 31
  %v73 = vsub.s32 32, %v72
  %v74 = vshrl.u32 683565275, %v73
  %v75 = vshll.u32 683565275, %v72
  %v76 = vshrl.u32 2475754826, %v73
  %v77 = vor.u32 %v75, %v76
  %v78 = vshll.u32 2475754826, %v72
  %v79 = vshrl.u32 2131351028, %v73
  %v80 = vor.u32 %v78, %v79
  %v81 = vshll.u32 2131351028, %v72
  %v82 = vshrl.u32 2102212464, %v73
  %v83 = vor.u32 %v81, %v82
  %v84 = vshll.u32 2102212464, %v72
  %v85 = vshrl.u32 920167782, %v73
  %v86 = vor.u32 %v84, %v85
  %v87 = vshll.u32 920167782, %v72
  %v88 = vshrl.u32 1326507024, %v73
  %v89 = vor.u32 %v87, %v88
  %vm90 = vcmp.lt.s32.totalorder %v71, 1
  %vm91 = vcmp.lt.s32.totalorder %v71, 2
  %vm92 = vcmp.lt.s32.totalorder %v71, 3
  %vm93 = vcmp.lt.s32.totalorder %v71, 4
  %v94 = vsel %vm90, %v74, %v77
  %v95 = vsel %vm93, %v83, 2102212464
  %v96 = vsel %vm92, %v80, %v95
  %v97 = vsel %vm91, %v94, %v96
  %v98 = vsel %vm90, %v77, %v80
  %v99 = vsel %vm93, %v86, 920167782
  %v100 = vsel %vm92, %v83, %v99
  %v101 = vsel %vm91, %v98, %v100
  %v102 = vsel %vm90, %v80, %v83
  %v103 = vsel %vm93, %v89, 1326507024
  %v104 = vsel %vm92, %v86, %v103
  %v105 = vsel %vm91, %v102, %v104
  %v106 = vshll.u32 %v66, 8
  %v107 = vand.u32 %v106, 65535
  %v108 = vshrl.u32 %v106, 16
  %v109 = vand.u32 %v105, 65535
  %v110 = vshrl.u32 %v105, 16
  %v111 = vmul.u32 %v107, %v109
  %v112 = vmul.u32 %v107, %v110
  %v113 = vmul.u32 %v108, %v109
  %v114 = vmul.u32 %v108, %v110
  %v115 = vshll.u32 %v112, 16
  %v116 = vshrl.u32 %v112, 16
  %v117 = vshll.u32 %v113, 16
  %v118 = vshrl.u32 %v113, 16
  %vm119 = vc.u32 %v111, %v115
  %v120 = vsel %vm119, 1, 0
  %v121 = vadd.s32 %v111, %v115
  %v122 = vadd.s32 %v114, %v120
  %vm123 = vc.u32 %v121, %v117
  %v124 = vsel %vm123, 1, 0
  %v125 = vadd.s32 %v121, %v117
  %v126 = vadd.s32 %v122, %v124
  %v127 = vadd.s32 %v126, %v116
  %v128 = vadd.s32 %v127, %v118
  %v129 = vand.u32 %v106, 65535
  %v130 = vshrl.u32 %v106, 16
  %v131 = vand.u32 %v101, 65535
  %v132 = vshrl.u32 %v101, 16
  %v133 = vmul.u32 %v129, %v131
  %v134 = vmul.u32 %v129, %v132
  %v135 = vmul.u32 %v130, %v131
  %v136 = vmul.u32 %v130, %v132
  %v137 = vshll.u32 %v134, 16
  %v138 = vshrl.u32 %v134, 16
  %v139 = vshll.u32 %v135, 16
  %v140 = vshrl.u32 %v135, 16
  %vm141 = vc.u32 %v133, %v137
  %v142 = vsel %vm141, 1, 0
  %v143 = vadd.s32 %v133, %v137
  %v144 = vadd.s32 %v136, %v142
  %vm145 = vc.u32 %v143, %v139
  %v146 = vsel %vm145, 1, 0
  %v147 = vadd.s32 %v143, %v139
  %v148 = vadd.s32 %v144, %v146
  %v149 = vadd.s32 %v148, %v138
  %v150 = vadd.s32 %v149, %v140
  %v151 = vmul.u32 %v106, %v97
  %v152 = vadd.s32 %v128, %v147
  %vm153 = vc.u32 %v128, %v147
  %v154 = vadd.s32 %v150, 1
  %v155 = vsel %vm153, %v154, %v150
  %v156 = vadd.s32 %v151, %v155
  %v157 = vadd.s32 %v156, 536870912
  %v158 = vshrl.u32 %v157, 30
  %v159 = vshll.u32 %v158, 30
  %v160 = vsub.s32 %v156, %v159
  %vm161 = vcmp.lt.s32.totalorder %v160, 0
  %v162 = vsub.s32 0, %v160
  %v163 = vsel %vm161, %v162, %v160
  %v164 = vclz %v163
  %v165 = vsub.s32 %v164, 2
  %vm166 = vcmp.gt.s32.totalorder 0, %v165
  %v167 = vsel %vm166, 0, %v165
  %v168 = vsub.s32 32, %v167
  %v169 = vshll.u32 %v160, %v167
  %v170 = vshrl.u32 %v152, %v168
  %v171 = vor.u32 %v169, %v170
  %v172 = vsub.s32 4294967266, %v167
  %v173 = vadd.s32 %v172, 127
  %v174 = vshll.u32 %v173, 23
  %v175 = vor.u32 4788187, %v174
  %v176 = vand.u32 2147483647, %v175
  %v178 = vcvt.s32.f32 %v171
  %v179 = vmul.f32 %v178, %v176
  %v180 = vxor.u32 %v179, 2147483648
  %v181 = vsel %vm60, %v180, %v179
  %v182 = vsub.s32 4, %v158
  %v183 = vsel %vm60, %v182, %v158
  %v184 = vsel %vm59, %v53, %v181
  %v185 = vsel %vm59, 0, %v183
  %v186 = vmul.f32 %v184, %v184
  %v187 = vmul.f32 %v186, -0.001358992
  %v188 = vadd.f32 %v187, 0.041655596
  %v189 = vmul.f32 %v186, %v188
  %v190 = vadd.f32 %v189, -0.4999988
  %v191 = vmul.f32 %v186, %v190
  %v192 = vadd.f32 1.0, %v191
  %v193 = vmul.f32 %v184, %v184
  %v194 = vmul.f32 %v193, -0.00019511016
  %v195 = vadd.f32 %v194, 0.008332121
  %v196 = vmul.f32 %v193, %v195
  %v197 = vadd.f32 %v196, -0.16666654
  %v198 = vmul.f32 %v193, %v197
  %v199 = vadd.f32 %v198, 1.0
  %v200 = vmul.f32 %v199, %v184
  %vm201 = vweird.f32 %v53
  %v202 = vand.u32 %v185, 3
  %vm203 = vcmp.lt.s32.totalorder %v202, 2
  %vm204 = vcmp.eq.s32.totalorder %v202, 0
  %v205 = vxor.u32 %v200, 2147483648
  %v206 = vsel %vm204, %v192, %v205
  %vm207 = vcmp.eq.s32.totalorder %v202, 2
  %v208 = vxor.u32 %v192, 2147483648
  %v209 = vsel %vm207, %v208, %v200
  %v210 = vsel %vm203, %v206, %v209
  %v211 = vsel %vm201, nan, %v210
  %v212 = vand.u32 2147483647, %v56
  %vm213 = vcmp.le.f32.partialorder %v212, 0.7853982
  %vm214 = vcmp.lt.s32.totalorder %v56, 0
  %v215 = vand.u32 %v56, 2139095040
  %v216 = vshrl.u32 %v215, 23
  %v217 = vsub.s32 %v216, 127
  %v218 = vand.u32 2147483647, %v56
  %v219 = vand.u32 %v218, 8388607
  %v220 = vor.u32 %v219, 8388608
  %v221 = vsub.s32 0, %v220
  %v222 = vadd.s32 %v217, 1
  %vm223 = vcmp.gt.s32.totalorder %v222, 0
  %v224 = vsel %vm223, %v222, 0
  %v225 = vshrl.u32 %v224, 5
  %v226 = vand.u32 %v224, 31
  %v227 = vsub.s32 32, %v226
  %v228 = vshrl.u32 683565275, %v227
  %v229 = vshll.u32 683565275, %v226
  %v230 = vshrl.u32 2475754826, %v227
  %v231 = vor.u32 %v229, %v230
  %v232 = vshll.u32 2475754826, %v226
  %v233 = vshrl.u32 2131351028, %v227
  %v234 = vor.u32 %v232, %v233
  %v235 = vshll.u32 2131351028, %v226
  %v236 = vshrl.u32 2102212464, %v227
  %v237 = vor.u32 %v235, %v236
  %v238 = vshll.u32 2102212464, %v226
  %v239 = vshrl.u32 920167782, %v227
  %v240 = vor.u32 %v238, %v239
  %v241 = vshll.u32 920167782, %v226
  %v242 = vshrl.u32 1326507024, %v227
  %v243 = vor.u32 %v241, %v242
  %vm244 = vcmp.lt.s32.totalorder %v225, 1
  %vm245 = vcmp.lt.s32.totalorder %v225, 2
  %vm246 = vcmp.lt.s32.totalorder %v225, 3
  %vm247 = vcmp.lt.s32.totalorder %v225, 4
  %v248 = vsel %vm244, %v228, %v231
  %v249 = vsel %vm247, %v237, 2102212464
  %v250 = vsel %vm246, %v234, %v249
  %v251 = vsel %vm245, %v248, %v250
  %v252 = vsel %vm244, %v231, %v234
  %v253 = vsel %vm247, %v240, 920167782
  %v254 = vsel %vm246, %v237, %v253
  %v255 = vsel %vm245, %v252, %v254
  %v256 = vsel %vm244, %v234, %v237
  %v257 = vsel %vm247, %v243, 1326507024
  %v258 = vsel %vm246, %v240, %v257
  %v259 = vsel %vm245, %v256, %v258
  %v260 = vshll.u32 %v220, 8
  %v261 = vand.u32 %v260, 65535
  %v262 = vshrl.u32 %v260, 16
  %v263 = vand.u32 %v259, 65535
  %v264 = vshrl.u32 %v259, 16
  %v265 = vmul.u32 %v261, %v263
  %v266 = vmul.u32 %v261, %v264
  %v267 = vmul.u32 %v262, %v263
  %v268 = vmul.u32 %v262, %v264
  %v269 = vshll.u32 %v266, 16
  %v270 = vshrl.u32 %v266, 16
  %v271 = vshll.u32 %v267, 16
  %v272 = vshrl.u32 %v267, 16
  %vm273 = vc.u32 %v265, %v269
  %v274 = vsel %vm273, 1, 0
  %v275 = vadd.s32 %v265, %v269
  %v276 = vadd.s32 %v268, %v274
  %vm277 = vc.u32 %v275, %v271
  %v278 = vsel %vm277, 1, 0
  %v279 = vadd.s32 %v275, %v271
  %v280 = vadd.s32 %v276, %v278
  %v281 = vadd.s32 %v280, %v270
  %v282 = vadd.s32 %v281, %v272
  %v283 = vand.u32 %v260, 65535
  %v284 = vshrl.u32 %v260, 16
  %v285 = vand.u32 %v255, 65535
  %v286 = vshrl.u32 %v255, 16
  %v287 = vmul.u32 %v283, %v285
  %v288 = vmul.u32 %v283, %v286
  %v289 = vmul.u32 %v284, %v285
  %v290 = vmul.u32 %v284, %v286
  %v291 = vshll.u32 %v288, 16
  %v292 = vshrl.u32 %v288, 16
  %v293 = vshll.u32 %v289, 16
  %v294 = vshrl.u32 %v289, 16
  %vm295 = vc.u32 %v287, %v291
  %v296 = vsel %vm295, 1, 0
  %v297 = vadd.s32 %v287, %v291
  %v298 = vadd.s32 %v290, %v296
  %vm299 = vc.u32 %v297, %v293
  %v300 = vsel %vm299, 1, 0
  %v301 = vadd.s32 %v297, %v293
  %v302 = vadd.s32 %v298, %v300
  %v303 = vadd.s32 %v302, %v292
  %v304 = vadd.s32 %v303, %v294
  %v305 = vmul.u32 %v260, %v251
  %v306 = vadd.s32 %v282, %v301
  %vm307 = vc.u32 %v282, %v301
  %v308 = vadd.s32 %v304, 1
  %v309 = vsel %vm307, %v308, %v304
  %v310 = vadd.s32 %v305, %v309
  %v311 = vadd.s32 %v310, 536870912
  %v312 = vshrl.u32 %v311, 30
  %v313 = vshll.u32 %v312, 30
  %v314 = vsub.s32 %v310, %v313
  %vm315 = vcmp.lt.s32.totalorder %v314, 0
  %v316 = vsub.s32 0, %v314
  %v317 = vsel %vm315, %v316, %v314
  %v318 = vclz %v317
  %v319 = vsub.s32 %v318, 2
  %vm320 = vcmp.gt.s32.totalorder 0, %v319
  %v321 = vsel %vm320, 0, %v319
  %v322 = vsub.s32 32, %v321
  %v323 = vshll.u32 %v314, %v321
  %v324 = vshrl.u32 %v306, %v322
  %v325 = vor.u32 %v323, %v324
  %v326 = vsub.s32 4294967266, %v321
  %v327 = vadd.s32 %v326, 127
  %v328 = vshll.u32 %v327, 23
  %v329 = vor.u32 4788187, %v328
  %v330 = vand.u32 2147483647, %v329
  %v332 = vcvt.s32.f32 %v325
  %v333 = vmul.f32 %v332, %v330
  %v334 = vxor.u32 %v333, 2147483648
  %v335 = vsel %vm214, %v334, %v333
  %v336 = vsub.s32 4, %v312
  %v337 = vsel %vm214, %v336, %v312
  %v338 = vsel %vm213, %v56, %v335
  %v339 = vsel %vm213, 0, %v337
  %v340 = vmul.f32 %v338, %v338
  %v341 = vmul.f32 %v340, -0.001358992
  %v342 = vadd.f32 %v341, 0.041655596
  %v343 = vmul.f32 %v340, %v342
  %v344 = vadd.f32 %v343, -0.4999988
  %v345 = vmul.f32 %v340, %v344
  %v346 = vadd.f32 1.0, %v345
  %v347 = vmul.f32 %v338, %v338
  %v348 = vmul.f32 %v347, -0.00019511016
  %v349 = vadd.f32 %v348, 0.008332121
  %v350 = vmul.f32 %v347, %v349
  %v351 = vadd.f32 %v350, -0.16666654
  %v352 = vmul.f32 %v347, %v351
  %v353 = vadd.f32 %v352, 1.0
  %v354 = vmul.f32 %v353, %v338
  %vm355 = vweird.f32 %v56
  %v356 = vand.u32 %v339, 3
  %vm357 = vcmp.lt.s32.totalorder %v356, 2
  %vm358 = vcmp.eq.s32.totalorder %v356, 0
  %v359 = vxor.u32 %v354, 2147483648
  %v360 = vsel %vm358, %v346, %v359
  %vm361 = vcmp.eq.s32.totalorder %v356, 2
  %v362 = vxor.u32 %v346, 2147483648
  %v363 = vsel %vm361, %v362, %v354
  %v364 = vsel %vm357, %v360, %v363
  %v365 = vsel %vm355, nan, %v364
  %v366 = vmul.f32 %v47, 1.442695
  %v367 = vpow.pop %v366
  %v368 = vmul.f32 %v50, 1.442695
  %v369 = vpow.pop %v368
  %v370 = vmul.f32 %v211, %v367
  %v371 = vmul.f32 %v365, %v369
  %372 = vst [vmem:[%s2] sm:$0xff] %v370
  %373 = vst [vmem:[%s2 + $0x8] sm:$0xff] %v371
  // Predicated region
  $region10: #{normalized_regular_herglotz_pe.1} parent=0 // pred_check
    _
  $region11: #{normalized_regular_herglotz_pe.1} parent=0 // pred_check_branch
    %375 = sbr.rel (0) target = $region13
  $region12: #{normalized_regular_herglotz_pe.1} parent=0 // pred_region
    _
  $region13: #{normalized_regular_herglotz_pe.1} parent=0 // pred_fallthru
    _
  // Predicated region
  $region14: #{normalized_regular_herglotz_pe.1} parent=0 // pred_check
    _
  $region15: #{normalized_regular_herglotz_pe.1} parent=0 // pred_check_branch
    %377 = sbr.rel (0) target = $region17
  $region16: #{normalized_regular_herglotz_pe.1} parent=0 // pred_region
    _
  $region17: #{normalized_regular_herglotz_pe.1} parent=0 // pred_fallthru
    _

</llo_original>
